<compile_context>
chip_gen: v7x
topology: tpu7x:2x2x1
jax: 0.10.0
libtpu: 0.0.40
codegen_flags: <defaults>
</compile_context>

<pallas_src>
import jax
import jax.numpy as jnp
from jax import lax
from jax.experimental import pallas as pl
from jax.experimental.pallas import tpu as pltpu


def _u32_const(v):
    """uint32 hex constant as a two's-complement int32 jnp scalar."""
    v &= 0xFFFFFFFF
    if v >= 1 << 31:
        v -= 1 << 32
    return jnp.int32(v)


def _srl(v, k):
    """Logical right shift for int32 arrays (arithmetic shift + sign mask)."""
    return jnp.bitwise_and(v >> k, jnp.int32((1 << (32 - k)) - 1))


def embracenet_kernel(seed_ref, x_ref, o_ref):
    m, tb, c = x_ref.shape

    # ---- availability per modality (native dtype, no casts) ----------------
    # avail[i]: (tb, 1) float32, 1.0 iff modality i has any nonzero feature.
    avail = []
    for i in range(m):
        a = jnp.any(x_ref[i] != 0, axis=-1, keepdims=True)      # (tb, 1) bool
        avail.append(a.astype(jnp.float32))
    denom = avail[0]
    for i in range(1, m):
        denom = denom + avail[i]                                 # integer-valued f32

    # ---- per-(row, channel) uniform randoms via a counter hash -------------
    # Pure integer VPU ops (lowbias32-style finalizer); deterministic given
    # (seed, global row index, channel) regardless of tiling / core placement.
    pid = pl.program_id(0)
    row = lax.broadcasted_iota(jnp.int32, (tb, c), 0) + pid * tb
    col = lax.broadcasted_iota(jnp.int32, (tb, c), 1)
    h = row * jnp.int32(c) + col                                 # unique counter
    h = h ^ (seed_ref[0] * _u32_const(0x9E3779B9))
    h = h ^ _srl(h, 16)
    h = h * _u32_const(0x7FEB352D)
    h = h ^ _srl(h, 15)
    h = h * _u32_const(0x846CA68B)
    h = h ^ _srl(h, 16)
    bits24 = _srl(h, 8)                                          # [0, 2^24)
    u = bits24.astype(jnp.float32) * jnp.float32(1.0 / (1 << 24))  # [0, 1)

    # Scale by the integer availability count so CDF bin boundaries are exact
    # integers; clamp so the draw always lands strictly inside the last
    # available bin (no sample dropped by rounding).
    scaled_u = jnp.minimum(u * denom, denom - 0.5)               # (tb, c)

    # ---- inverse-CDF modality pick, select-into-accumulator ----------------
    # Bins are [0, a0), [a0, a0+a1), ...  sel_i = (scaled_u < hi_i) & ~lt_prev.
    # NOTE: if a batch row has no available modality at all (denom == 0), the
    # output row is 0 (the PyTorch reference would divide by zero there).
    acc = jnp.zeros((tb, c), x_ref.dtype)
    hi = jnp.zeros_like(denom)
    lt_prev = None
    for i in range(m):
        hi = hi + avail[i]
        lt = scaled_u < hi                                       # (tb, c) bool
        sel = lt if lt_prev is None else jnp.logical_and(lt, jnp.logical_not(lt_prev))
        acc = jnp.where(sel, x_ref[i], acc)
        lt_prev = lt

    o_ref[...] = acc


def _choose_tb(m, b, c, itemsize, budget_bytes):
    """Largest batch tile whose double-buffered blocks + f32 working set fit."""
    # Per batch-row: double-buffered (m, tb, c) input + (tb, c) output blocks,
    # plus ~6 live (tb, c) f32 temporaries inside the kernel.
    per_row = 2 * (m + 1) * c * itemsize + 6 * c * 4
    max_rows = max(8, budget_bytes // per_row)
    if b <= max_rows:
        return b
    tb = (max_rows // 8) * 8
    while tb >= 8:
        if b % tb == 0:
            return tb                                            # multiple of 8, divides b
        tb -= 8
    # TODO(synk): pad the batch axis instead of falling back to a single tile
    # when b has no multiple-of-8 divisor that fits the VMEM budget.
    return b


def embrace_net(x, seed, *, tb=None, vmem_budget_bytes=20 * 1024 * 1024):
    """EmbraceNet forward. x: (m, b, c) float array. Returns e: (b, c)."""
    m, b, c = x.shape

    # Keep the output lane-dense: pad channels to a multiple of 128 (zero
    # padding does not change availability; padded columns are sliced off).
    c_pad = (-c) % 128
    if c_pad:
        x = jnp.pad(x, ((0, 0), (0, 0), (0, c_pad)))
    cp = c + c_pad

    itemsize = x.dtype.itemsize
    if tb is None:
        tb = _choose_tb(m, b, cp, itemsize, vmem_budget_bytes)
    assert b % tb == 0 and (tb == b or tb % 8 == 0)

    # Explicit VMEM limit derived from the chosen tile (+ headroom); safe on
    # v5e/v6e (128 MiB physical) and v7x (64 MiB physical, 32 MiB scoped default).
    vmem_need = 2 * (m + 1) * tb * cp * itemsize + 6 * tb * cp * 4
    vmem_limit = int(max(vmem_need + 8 * 1024 * 1024, 32 * 1024 * 1024))

    seed_arr = jnp.asarray([seed], dtype=jnp.int32)
    e = pl.pallas_call(
        embracenet_kernel,
        out_shape=jax.ShapeDtypeStruct((b, cp), x.dtype),
        grid=(b // tb,),
        in_specs=[
            pl.BlockSpec(memory_space=pltpu.MemorySpace.SMEM),    # seed (scalar)
            pl.BlockSpec((m, tb, cp), lambda j: (0, j, 0)),       # x tile
        ],
        out_specs=pl.BlockSpec((tb, cp), lambda j: (j, 0)),
        compiler_params=pltpu.CompilerParams(
            dimension_semantics=("parallel",),                    # batch tiles independent
            vmem_limit_bytes=vmem_limit),
    )(seed_arr, x)
    return e[:, :c] if c_pad else e


if __name__ == "__main__":
    # Small shapes consistent with the module: m modalities, batch b, c feats.
    m, b, c = 4, 8, 128
    key = jax.random.PRNGKey(0)
    x = jax.random.normal(key, (m, b, c), dtype=jnp.float32)

    # Simulate missing modality data (all-zero feature vectors) so the
    # selection-probability adjustment path is exercised.
    x = x.at[1, 0, :].set(0.0)
    x = x.at[0, 5, :].set(0.0)
    x = x.at[3, 5, :].set(0.0)

    e = embrace_net(x, seed=1234)
    jax.block_until_ready(e)
    assert e.shape == (b, c)

    # Sanity check: every output element must equal the value of one of the
    # *available* modalities at that (batch, channel) position.
    avail = jnp.any(x != 0, axis=-1)                              # (m, b)
    matches = jnp.isclose(e[None, :, :], x) & avail[:, :, None]   # (m, b, c)
    assert bool(jnp.all(jnp.any(matches, axis=0))), "bad modality selection"

    # Exercise the ragged-channel (lane padding) path as well.
    m2, b2, c2 = 3, 16, 96
    x2 = jax.random.normal(jax.random.PRNGKey(1), (m2, b2, c2), dtype=jnp.float32)
    x2 = x2.at[2, 3, :].set(0.0)
    e2 = embrace_net(x2, seed=7)
    jax.block_until_ready(e2)
    assert e2.shape == (b2, c2)
    avail2 = jnp.any(x2 != 0, axis=-1)
    matches2 = jnp.isclose(e2[None, :, :], x2) & avail2[:, :, None]
    assert bool(jnp.all(jnp.any(matches2, axis=0))), "bad modality selection (padded)"

    print("KERNEL_OK")
</pallas_src>

<mosaic_0001>
module attributes {stable_mosaic.version = 11 : i64} {
  func.func @embracenet_kernel(%arg0: i32, %arg1: memref<1xi32, #tpu.memory_space<smem>>, %arg2: memref<4x8x128xf32, #tpu.memory_space<vmem>>, %arg3: memref<8x128xf32, #tpu.memory_space<vmem>>) attributes {dimension_semantics = [#tpu.dimension_semantics<parallel>], iteration_bounds = array<i64: 1>, scalar_prefetch = 0 : i64, scratch_operands = 0 : i64, tpu.core_type = #tpu.core_type<tc>, window_params = [{transform_indices = @transform_0, window_bounds = array<i64: 1>}, {transform_indices = @transform_1, window_bounds = array<i64: 4, 8, 128>}, {transform_indices = @transform_2, window_bounds = array<i64: 8, 128>}]} {
    %c0 = arith.constant 0 : index
    %c0_0 = arith.constant 0 : index
    %c0_1 = arith.constant 0 : index
    %0 = vector.load %arg2[%c0, %c0_0, %c0_1] : memref<4x8x128xf32, #tpu.memory_space<vmem>>, vector<1x8x128xf32>
    %1 = vector.shape_cast %0 : vector<1x8x128xf32> to vector<8x128xf32>
    %cst = arith.constant 0.000000e+00 : f32
    %2 = vector.broadcast %cst : f32 to vector<8x128xf32>
    %3 = arith.cmpf one, %1, %2 : vector<8x128xf32>
    %cst_2 = arith.constant 1.000000e+00 : f32
    %cst_3 = arith.constant 0.000000e+00 : f32
    %4 = vector.broadcast %cst_2 : f32 to vector<8x128xf32>
    %5 = vector.broadcast %cst_3 : f32 to vector<8x128xf32>
    %6 = arith.select %3, %4, %5 : vector<8x128xi1>, vector<8x128xf32>
    %cst_4 = arith.constant dense<0xFF800000> : vector<8xf32>
    %7 = vector.multi_reduction <maximumf>, %6, %cst_4 [1] : vector<8x128xf32> to vector<8xf32>
    %cst_5 = arith.constant 0.000000e+00 : f32
    %8 = vector.broadcast %cst_5 : f32 to vector<8xf32>
    %9 = arith.cmpf ogt, %7, %8 : vector<8xf32>
    %10 = vector.shape_cast %9 : vector<8xi1> to vector<8x1xi1>
    %11 = arith.extui %10 : vector<8x1xi1> to vector<8x1xi32>
    %12 = arith.sitofp %11 : vector<8x1xi32> to vector<8x1xf32>
    %c1 = arith.constant 1 : index
    %c0_6 = arith.constant 0 : index
    %c0_7 = arith.constant 0 : index
    %13 = vector.load %arg2[%c1, %c0_6, %c0_7] : memref<4x8x128xf32, #tpu.memory_space<vmem>>, vector<1x8x128xf32>
    %14 = vector.shape_cast %13 : vector<1x8x128xf32> to vector<8x128xf32>
    %cst_8 = arith.constant 0.000000e+00 : f32
    %15 = vector.broadcast %cst_8 : f32 to vector<8x128xf32>
    %16 = arith.cmpf one, %14, %15 : vector<8x128xf32>
    %cst_9 = arith.constant 1.000000e+00 : f32
    %cst_10 = arith.constant 0.000000e+00 : f32
    %17 = vector.broadcast %cst_9 : f32 to vector<8x128xf32>
    %18 = vector.broadcast %cst_10 : f32 to vector<8x128xf32>
    %19 = arith.select %16, %17, %18 : vector<8x128xi1>, vector<8x128xf32>
    %cst_11 = arith.constant dense<0xFF800000> : vector<8xf32>
    %20 = vector.multi_reduction <maximumf>, %19, %cst_11 [1] : vector<8x128xf32> to vector<8xf32>
    %cst_12 = arith.constant 0.000000e+00 : f32
    %21 = vector.broadcast %cst_12 : f32 to vector<8xf32>
    %22 = arith.cmpf ogt, %20, %21 : vector<8xf32>
    %23 = vector.shape_cast %22 : vector<8xi1> to vector<8x1xi1>
    %24 = arith.extui %23 : vector<8x1xi1> to vector<8x1xi32>
    %25 = arith.sitofp %24 : vector<8x1xi32> to vector<8x1xf32>
    %c2 = arith.constant 2 : index
    %c0_13 = arith.constant 0 : index
    %c0_14 = arith.constant 0 : index
    %26 = vector.load %arg2[%c2, %c0_13, %c0_14] : memref<4x8x128xf32, #tpu.memory_space<vmem>>, vector<1x8x128xf32>
    %27 = vector.shape_cast %26 : vector<1x8x128xf32> to vector<8x128xf32>
    %cst_15 = arith.constant 0.000000e+00 : f32
    %28 = vector.broadcast %cst_15 : f32 to vector<8x128xf32>
    %29 = arith.cmpf one, %27, %28 : vector<8x128xf32>
    %cst_16 = arith.constant 1.000000e+00 : f32
    %cst_17 = arith.constant 0.000000e+00 : f32
    %30 = vector.broadcast %cst_16 : f32 to vector<8x128xf32>
    %31 = vector.broadcast %cst_17 : f32 to vector<8x128xf32>
    %32 = arith.select %29, %30, %31 : vector<8x128xi1>, vector<8x128xf32>
    %cst_18 = arith.constant dense<0xFF800000> : vector<8xf32>
    %33 = vector.multi_reduction <maximumf>, %32, %cst_18 [1] : vector<8x128xf32> to vector<8xf32>
    %cst_19 = arith.constant 0.000000e+00 : f32
    %34 = vector.broadcast %cst_19 : f32 to vector<8xf32>
    %35 = arith.cmpf ogt, %33, %34 : vector<8xf32>
    %36 = vector.shape_cast %35 : vector<8xi1> to vector<8x1xi1>
    %37 = arith.extui %36 : vector<8x1xi1> to vector<8x1xi32>
    %38 = arith.sitofp %37 : vector<8x1xi32> to vector<8x1xf32>
    %c3 = arith.constant 3 : index
    %c0_20 = arith.constant 0 : index
    %c0_21 = arith.constant 0 : index
    %39 = vector.load %arg2[%c3, %c0_20, %c0_21] : memref<4x8x128xf32, #tpu.memory_space<vmem>>, vector<1x8x128xf32>
    %40 = vector.shape_cast %39 : vector<1x8x128xf32> to vector<8x128xf32>
    %cst_22 = arith.constant 0.000000e+00 : f32
    %41 = vector.broadcast %cst_22 : f32 to vector<8x128xf32>
    %42 = arith.cmpf one, %40, %41 : vector<8x128xf32>
    %cst_23 = arith.constant 1.000000e+00 : f32
    %cst_24 = arith.constant 0.000000e+00 : f32
    %43 = vector.broadcast %cst_23 : f32 to vector<8x128xf32>
    %44 = vector.broadcast %cst_24 : f32 to vector<8x128xf32>
    %45 = arith.select %42, %43, %44 : vector<8x128xi1>, vector<8x128xf32>
    %cst_25 = arith.constant dense<0xFF800000> : vector<8xf32>
    %46 = vector.multi_reduction <maximumf>, %45, %cst_25 [1] : vector<8x128xf32> to vector<8xf32>
    %cst_26 = arith.constant 0.000000e+00 : f32
    %47 = vector.broadcast %cst_26 : f32 to vector<8xf32>
    %48 = arith.cmpf ogt, %46, %47 : vector<8xf32>
    %49 = vector.shape_cast %48 : vector<8xi1> to vector<8x1xi1>
    %50 = arith.extui %49 : vector<8x1xi1> to vector<8x1xi32>
    %51 = arith.sitofp %50 : vector<8x1xi32> to vector<8x1xf32>
    %52 = arith.addf %12, %25 : vector<8x1xf32>
    %53 = arith.addf %52, %38 : vector<8x1xf32>
    %54 = arith.addf %53, %51 : vector<8x1xf32>
    %55 = tpu.iota {dimensions = array<i32: 0>} : vector<8x128xi32>
    %c8_i32 = arith.constant 8 : i32
    %56 = arith.muli %arg0, %c8_i32 : i32
    %57 = vector.broadcast %56 : i32 to vector<8x128xi32>
    %58 = arith.addi %55, %57 : vector<8x128xi32>
    %59 = tpu.iota {dimensions = array<i32: 1>} : vector<8x128xi32>
    %c128_i32 = arith.constant 128 : i32
    %60 = vector.broadcast %c128_i32 : i32 to vector<8x128xi32>
    %61 = arith.muli %58, %60 : vector<8x128xi32>
    %62 = arith.addi %61, %59 : vector<8x128xi32>
    %c0_27 = arith.constant 0 : index
    %63 = memref.load %arg1[%c0_27] : memref<1xi32, #tpu.memory_space<smem>>
    %c-1640531527_i32 = arith.constant -1640531527 : i32
    %64 = arith.muli %63, %c-1640531527_i32 : i32
    %65 = vector.broadcast %64 : i32 to vector<8x128xi32>
    %66 = arith.xori %62, %65 : vector<8x128xi32>
    %c16_i32 = arith.constant 16 : i32
    %67 = vector.broadcast %c16_i32 : i32 to vector<8x128xi32>
    %68 = arith.shrsi %66, %67 : vector<8x128xi32>
    %c65535_i32 = arith.constant 65535 : i32
    %69 = vector.broadcast %c65535_i32 : i32 to vector<8x128xi32>
    %70 = arith.andi %68, %69 : vector<8x128xi32>
    %71 = arith.xori %66, %70 : vector<8x128xi32>
    %c2146121005_i32 = arith.constant 2146121005 : i32
    %72 = vector.broadcast %c2146121005_i32 : i32 to vector<8x128xi32>
    %73 = arith.muli %71, %72 : vector<8x128xi32>
    %c15_i32 = arith.constant 15 : i32
    %74 = vector.broadcast %c15_i32 : i32 to vector<8x128xi32>
    %75 = arith.shrsi %73, %74 : vector<8x128xi32>
    %c131071_i32 = arith.constant 131071 : i32
    %76 = vector.broadcast %c131071_i32 : i32 to vector<8x128xi32>
    %77 = arith.andi %75, %76 : vector<8x128xi32>
    %78 = arith.xori %73, %77 : vector<8x128xi32>
    %c-2073254261_i32 = arith.constant -2073254261 : i32
    %79 = vector.broadcast %c-2073254261_i32 : i32 to vector<8x128xi32>
    %80 = arith.muli %78, %79 : vector<8x128xi32>
    %c16_i32_28 = arith.constant 16 : i32
    %81 = vector.broadcast %c16_i32_28 : i32 to vector<8x128xi32>
    %82 = arith.shrsi %80, %81 : vector<8x128xi32>
    %c65535_i32_29 = arith.constant 65535 : i32
    %83 = vector.broadcast %c65535_i32_29 : i32 to vector<8x128xi32>
    %84 = arith.andi %82, %83 : vector<8x128xi32>
    %85 = arith.xori %80, %84 : vector<8x128xi32>
    %c8_i32_30 = arith.constant 8 : i32
    %86 = vector.broadcast %c8_i32_30 : i32 to vector<8x128xi32>
    %87 = arith.shrsi %85, %86 : vector<8x128xi32>
    %c16777215_i32 = arith.constant 16777215 : i32
    %88 = vector.broadcast %c16777215_i32 : i32 to vector<8x128xi32>
    %89 = arith.andi %87, %88 : vector<8x128xi32>
    %90 = arith.sitofp %89 : vector<8x128xi32> to vector<8x128xf32>
    %cst_31 = arith.constant 5.96046448E-8 : f32
    %91 = vector.broadcast %cst_31 : f32 to vector<8x128xf32>
    %92 = arith.mulf %90, %91 : vector<8x128xf32>
    %93 = vector.broadcast %54 : vector<8x1xf32> to vector<8x128xf32>
    %94 = arith.mulf %92, %93 : vector<8x128xf32>
    %cst_32 = arith.constant 5.000000e-01 : f32
    %95 = vector.broadcast %cst_32 : f32 to vector<8x1xf32>
    %96 = arith.subf %54, %95 : vector<8x1xf32>
    %97 = vector.broadcast %96 : vector<8x1xf32> to vector<8x128xf32>
    %98 = arith.minimumf %94, %97 : vector<8x128xf32>
    %cst_33 = arith.constant 0.000000e+00 : f32
    %99 = vector.broadcast %cst_33 : f32 to vector<8x128xf32>
    %cst_34 = arith.constant 0.000000e+00 : f32
    %100 = vector.broadcast %cst_34 : f32 to vector<8x1xf32>
    %101 = arith.addf %100, %12 : vector<8x1xf32>
    %102 = vector.broadcast %101 : vector<8x1xf32> to vector<8x128xf32>
    %103 = arith.cmpf olt, %98, %102 : vector<8x128xf32>
    %c0_35 = arith.constant 0 : index
    %c0_36 = arith.constant 0 : index
    %c0_37 = arith.constant 0 : index
    %104 = vector.load %arg2[%c0_35, %c0_36, %c0_37] : memref<4x8x128xf32, #tpu.memory_space<vmem>>, vector<1x8x128xf32>
    %105 = vector.shape_cast %104 : vector<1x8x128xf32> to vector<8x128xf32>
    %106 = arith.select %103, %105, %99 : vector<8x128xi1>, vector<8x128xf32>
    %107 = arith.addf %101, %25 : vector<8x1xf32>
    %108 = vector.broadcast %107 : vector<8x1xf32> to vector<8x128xf32>
    %109 = arith.cmpf olt, %98, %108 : vector<8x128xf32>
    %cst_38 = arith.constant dense<true> : vector<8x128xi1>
    %110 = arith.xori %103, %cst_38 : vector<8x128xi1>
    %111 = arith.andi %109, %110 : vector<8x128xi1>
    %c1_39 = arith.constant 1 : index
    %c0_40 = arith.constant 0 : index
    %c0_41 = arith.constant 0 : index
    %112 = vector.load %arg2[%c1_39, %c0_40, %c0_41] : memref<4x8x128xf32, #tpu.memory_space<vmem>>, vector<1x8x128xf32>
    %113 = vector.shape_cast %112 : vector<1x8x128xf32> to vector<8x128xf32>
    %114 = arith.select %111, %113, %106 : vector<8x128xi1>, vector<8x128xf32>
    %115 = arith.addf %107, %38 : vector<8x1xf32>
    %116 = vector.broadcast %115 : vector<8x1xf32> to vector<8x128xf32>
    %117 = arith.cmpf olt, %98, %116 : vector<8x128xf32>
    %cst_42 = arith.constant dense<true> : vector<8x128xi1>
    %118 = arith.xori %109, %cst_42 : vector<8x128xi1>
    %119 = arith.andi %117, %118 : vector<8x128xi1>
    %c2_43 = arith.constant 2 : index
    %c0_44 = arith.constant 0 : index
    %c0_45 = arith.constant 0 : index
    %120 = vector.load %arg2[%c2_43, %c0_44, %c0_45] : memref<4x8x128xf32, #tpu.memory_space<vmem>>, vector<1x8x128xf32>
    %121 = vector.shape_cast %120 : vector<1x8x128xf32> to vector<8x128xf32>
    %122 = arith.select %119, %121, %114 : vector<8x128xi1>, vector<8x128xf32>
    %123 = arith.addf %115, %51 : vector<8x1xf32>
    %124 = vector.broadcast %123 : vector<8x1xf32> to vector<8x128xf32>
    %125 = arith.cmpf olt, %98, %124 : vector<8x128xf32>
    %cst_46 = arith.constant dense<true> : vector<8x128xi1>
    %126 = arith.xori %117, %cst_46 : vector<8x128xi1>
    %127 = arith.andi %125, %126 : vector<8x128xi1>
    %c3_47 = arith.constant 3 : index
    %c0_48 = arith.constant 0 : index
    %c0_49 = arith.constant 0 : index
    %128 = vector.load %arg2[%c3_47, %c0_48, %c0_49] : memref<4x8x128xf32, #tpu.memory_space<vmem>>, vector<1x8x128xf32>
    %129 = vector.shape_cast %128 : vector<1x8x128xf32> to vector<8x128xf32>
    %130 = arith.select %127, %129, %122 : vector<8x128xi1>, vector<8x128xf32>
    %c0_50 = arith.constant 0 : index
    %c0_51 = arith.constant 0 : index
    %131 = vector.load %arg3[%c0_50, %c0_51] : memref<8x128xf32, #tpu.memory_space<vmem>>, vector<8x128xf32>
    tpu.vector_store %arg3[%c0_50, %c0_51], %130 {strides = array<i32>} : memref<8x128xf32, #tpu.memory_space<vmem>>, vector<8x128xf32>,
    return
  }
  func.func @transform_0(%arg0: i32) -> i32 {
    %c0_i32 = arith.constant 0 : i32
    %c0_i32_0 = arith.constant 0 : i32
    return %c0_i32 : i32
  }
  func.func @transform_1(%arg0: i32) -> (i32, i32, i32) {
    %c0_i32 = arith.constant 0 : i32
    %c0_i32_0 = arith.constant 0 : i32
    %c0_i32_1 = arith.constant 0 : i32
    return %c0_i32, %arg0, %c0_i32_0 : i32, i32, i32
  }
  func.func @transform_2(%arg0: i32) -> (i32, i32) {
    %c0_i32 = arith.constant 0 : i32
    %c0_i32_0 = arith.constant 0 : i32
    return %arg0, %c0_i32 : i32, i32
  }
}

</mosaic_0001>

<llo_original>
// kernel: tpu_custom_call.1
$region0: #{tpu_custom_call.1}
  #allocation0 [shape = 'u32[]', space=smem, size = 0x4, offset = 0x4, fixed_abs, tag = 'smem constant byte address 0x4 - core index']
  #allocation1 [shape = 'u32[144,128]{1,0:T(1,128)}', space=vmem, size = 0x12000, scoped, tag = 'internal scratch']
  #allocation2 [shape = 's32[1]{0:T(128)S(6)}', space=smem, size = 0x200, scoped, tag = 'scoped memory for tpu_custom_call.1']
  %s0 = inlined_call_operand.<no memory space> [shape: s32[1], index: 0, kind: input, shape index: {}]
  %s1 = inlined_call_operand.hbm [shape: f32[4,8,128], index: 1, kind: input, shape index: {}]
  %s2 = inlined_call_operand.hbm [shape: f32[8,128], index: 2, kind: output, shape index: {}]
  %s3 = sld [smem:[#allocation0]]
  $region22: #{tpu_custom_call.1} parent=0
    _
  %s5 = ssub.s32 1, %s3
  %s6 = scalar_select 0, %s5, %s3
  %7 = sst [smem:[#allocation2]] %s0
  $region1: #{tpu_custom_call.1} parent=0
    #allocation3 [shape = 'u8[16384]{0}', space=vmem, size = 0x4000, scoped, tag = 'input window, operand 1, single buffered']
    #allocation4 [shape = 's32[1]{0}', space=sflag, size = 0x4, scoped, tag = 'scoped memory for tpu_custom_call.1']
    #allocation5 [shape = 's32[1]{0}', space=sflag, size = 0x4, scoped, tag = 'scoped memory for tpu_custom_call.1']
    #allocation6 [shape = 'u8[4096]{0}', space=vmem, size = 0x1000, scoped, tag = 'output window, operand 0, single buffered']
    %8 = vsyncpa [#allocation4], 0
    %9 = vsyncpa [#allocation5], 0
    // Predicated region
    $region2: #{tpu_custom_call.1} parent=1 // pred_check
      _
    $region3: #{tpu_custom_call.1} parent=1 // pred_check_branch
      %11 = sbr.rel (0) target = $region5
    $region4: #{tpu_custom_call.1} parent=1 // pred_region
      _
    $region5: #{tpu_custom_call.1} parent=1 // pred_fallthru
      _
    // Predicated region
    $region6: #{tpu_custom_call.1} parent=1 // pred_check
      _
    $region7: #{tpu_custom_call.1} parent=1 // pred_check_branch
      %13 = sbr.rel (0) target = $region9
    $region8: #{tpu_custom_call.1} parent=1 // pred_region
      %s15 = ssub.s32 512, 512
      %16 = vsyncadd [#allocation4], %s15
      %s17 = sshll.u32 [#allocation3], 4
      %s18 = int_to_ptr.vmem [resolvable:$true] %s17
      %23 = dma.hbm_to_vmem [thread:$0]  %s1, 512, %s18, [#allocation4], 128, 128, 8
    $region9: #{tpu_custom_call.1} parent=1 // pred_fallthru
      _
    // Predicated region
    $region10: #{tpu_custom_call.1} parent=1 // pred_check
      _
    $region11: #{tpu_custom_call.1} parent=1 // pred_check_branch
      %25 = sbr.rel (0) target = $region13
    $region12: #{tpu_custom_call.1} parent=1 // pred_region
      %26 = dma.done [#allocation4], 512
    $region13: #{tpu_custom_call.1} parent=1 // pred_fallthru
      _
    %v27 = vld [vmem:[#allocation3] sm:$0xff]
    %vm28 = vcmp.ne.f32.partialorder %v27, 0.0
    %v29 = vsel %vm28, 1.0, 0.0
    %30 = vmax.xlane.f32.xlu0 %v29
    %v31 = vpop.xlane.xlu0 %30
    %vm32 = vcmp.gt.f32.partialorder %v31, 0.0
    %v33 = vsel %vm32, 1, 0
    %v34 = vcvt.s32.f32 %v33
    %s35 = scalar_lea.vmem [#allocation3], 8
    %v36 = vld [vmem:[%s35] sm:$0xff]
    %vm37 = vcmp.ne.f32.partialorder %v36, 0.0
    %v38 = vsel %vm37, 1.0, 0.0
    %39 = vmax.xlane.f32.xlu0 %v38
    %v40 = vpop.xlane.xlu0 %39
    %vm41 = vcmp.gt.f32.partialorder %v40, 0.0
    %v42 = vsel %vm41, 1, 0
    %v43 = vcvt.s32.f32 %v42
    %s44 = scalar_lea.vmem [#allocation3], 16
    %v45 = vld [vmem:[%s44] sm:$0xff]
    %vm46 = vcmp.ne.f32.partialorder %v45, 0.0
    %v47 = vsel %vm46, 1.0, 0.0
    %48 = vmax.xlane.f32.xlu0 %v47
    %v49 = vpop.xlane.xlu0 %48
    %vm50 = vcmp.gt.f32.partialorder %v49, 0.0
    %v51 = vsel %vm50, 1, 0
    %v52 = vcvt.s32.f32 %v51
    %s53 = scalar_lea.vmem [#allocation3], 24
    %v54 = vld [vmem:[%s53] sm:$0xff]
    %vm55 = vcmp.ne.f32.partialorder %v54, 0.0
    %v56 = vsel %vm55, 1.0, 0.0
    %57 = vmax.xlane.f32.xlu0 %v56
    %v58 = vpop.xlane.xlu0 %57
    %vm59 = vcmp.gt.f32.partialorder %v58, 0.0
    %v60 = vsel %vm59, 1, 0
    %v61 = vcvt.s32.f32 %v60
    %v62 = vadd.f32 %v34, %v43
    %v63 = vadd.f32 %v62, %v52
    %v64 = vadd.f32 %v63, %v61
    %v65 = vlaneseq
    %v66 = vshrl.u32 %v65, 7
    %s67 = smul.u32 0, 8
    %v68 = vstv %s67
    %v69 = vadd.s32 %v66, %v68
    %v70 = vlaneseq
    %v71 = vand.u32 %v70, 127
    %v72 = vmul.u32 %v69, 128
    %v73 = vadd.s32 %v72, %v71
    %s74 = sld [smem:[#allocation2]]
    %s75 = smul.u32 %s74, 2654435769
    %v76 = vstv %s75
    %v77 = vxor.u32 %v73, %v76
    %v78 = vshra.s32 %v77, 16
    %v79 = vand.u32 %v78, 65535
    %v80 = vxor.u32 %v77, %v79
    %v81 = vmul.u32 %v80, 2146121005
    %v82 = vshra.s32 %v81, 15
    %v83 = vand.u32 %v82, 131071
    %v84 = vxor.u32 %v81, %v83
    %v85 = vmul.u32 %v84, 2221713035
    %v86 = vshra.s32 %v85, 16
    %v87 = vand.u32 %v86, 65535
    %v88 = vxor.u32 %v85, %v87
    %v89 = vshra.s32 %v88, 8
    %v90 = vand.u32 %v89, 16777215
    %v91 = vcvt.s32.f32 %v90
    %v92 = vmul.f32 %v91, 5.9604645e-08
    %v93 = vmul.f32 %v92, %v64
    %v94 = vsub.f32 %v64, 0.5
    %v95 = vmin.f32 %v93, %v94
    %v96 = vadd.f32 %v34, 0.0
    %vm97 = vcmp.lt.f32.partialorder %v95, %v96
    %v98 = vsel %vm97, %v27, 0.0
    %v99 = vadd.f32 %v96, %v43
    %vm100 = vcmp.lt.f32.partialorder %v95, %v99
    %vm101 = vmxor %vm97, 1
    %vm102 = vmand %vm100, %vm101
    %v103 = vsel %vm102, %v36, %v98
    %v104 = vadd.f32 %v99, %v52
    %vm105 = vcmp.lt.f32.partialorder %v95, %v104
    %vm106 = vmxor %vm100, 1
    %vm107 = vmand %vm105, %vm106
    %v108 = vsel %vm107, %v45, %v103
    %v109 = vadd.f32 %v104, %v61
    %vm110 = vcmp.lt.f32.partialorder %v95, %v109
    %vm111 = vmxor %vm105, 1
    %vm112 = vmand %vm110, %vm111
    %v113 = vsel %vm112, %v54, %v108
    %114 = vst [vmem:[#allocation6] sm:$0xff] %v113
    // Predicated region
    $region14: #{tpu_custom_call.1} parent=1 // pred_check
      _
    $region15: #{tpu_custom_call.1} parent=1 // pred_check_branch
      %116 = sbr.rel (0) target = $region17
    $region16: #{tpu_custom_call.1} parent=1 // pred_region
      %s118 = ssub.s32 128, 128
      %119 = vsyncadd [#allocation5], %s118
      %s121 = sshll.u32 [#allocation6], 4
      %s122 = int_to_ptr.vmem [resolvable:$true] %s121
      %124 = dma.vmem_to_hbm [thread:$0]  %s122, 128, %s2, [#allocation5]
    $region17: #{tpu_custom_call.1} parent=1 // pred_fallthru
      _
    // Predicated region
    $region18: #{tpu_custom_call.1} parent=1 // pred_check
      _
    $region19: #{tpu_custom_call.1} parent=1 // pred_check_branch
      %126 = sbr.rel (0) target = $region21
    $region20: #{tpu_custom_call.1} parent=1 // pred_region
      %127 = dma.done [#allocation5], 128
    $region21: #{tpu_custom_call.1} parent=1 // pred_fallthru
      _
    %128 = vsyncpa [#allocation4], 1
    %129 = vsyncpa [#allocation5], 1

</llo_original>
